<compile_context>
chip_gen: v6e
topology: v6e:2x2x1
jax: 0.10.0
libtpu: 0.0.40
codegen_flags: <defaults>
</compile_context>

<pallas_src>
import functools

import jax
import jax.numpy as jnp
import numpy as np
from jax.experimental import pallas as pl
from jax.experimental.pallas import tpu as pltpu


def _genp_kernel(tl_ref, sl_ref, wres_ref, bres_ref, genp_ref, acc_ref, *,
                 compute_dtype):
    """One (tT, tS) genP tile, accumulated over D chunks (innermost grid axis)."""
    k = pl.program_id(3)

    @pl.when(k == 0)
    def _init():
        acc_ref[...] = jnp.zeros_like(acc_ref)

    tl = tl_ref[...]                      # (tT, dk)  target @ Wt^T chunk
    sl = sl_ref[...]                      # (tS, dk)  source @ Ws^T chunk
    w = wres_ref[...]                     # (1, dk)   LinearRes weight chunk

    # tanh on the EUP (bf16 on v6e/v7x if compute_dtype=bf16), multiply on the
    # VPU, reduce over the D chunk on the XLU -> lane-dense (tT, tS) tile.
    h = jnp.tanh((tl[:, None, :] + sl[None, :, :]).astype(compute_dtype))
    acc_ref[...] += jnp.sum(h.astype(jnp.float32) * w[:, None, :], axis=-1)

    @pl.when(k == pl.num_programs(3) - 1)
    def _finalize():
        genp_ref[...] = (acc_ref[...] + bres_ref[0]).astype(genp_ref.dtype)


def _pick_tile(dim, tile):
    # Use the requested tile if it divides evenly; otherwise fall back to the
    # full dimension (full-extent blocks are always layout-legal).
    return tile if dim % tile == 0 else dim


@functools.partial(
    jax.jit, static_argnames=("tile_t", "tile_s", "tile_d", "compute_dtype"))
def copynet_forward(source, target, w_src, w_tgt, w_res, b_res, w_prob, b_prob,
                    *, tile_t=128, tile_s=128, tile_d=128,
                    compute_dtype=jnp.float32):
    """Returns (genP, prob) matching the PyTorch CopyNet.forward."""
    B, S, D = source.shape
    T = target.shape[1]

    # --- hoisted out of the Pallas kernel (plain XLA, full MXU) -------------
    sl = jnp.einsum("bsd,ed->bse", source, w_src,
                    preferred_element_type=jnp.float32)            # (B, S, D)
    tl = jnp.einsum("btd,ed->bte", target, w_tgt,
                    preferred_element_type=jnp.float32)            # (B, T, D)
    prob = jax.nn.softmax(
        jnp.einsum("btd,pd->btp", target, w_prob,
                   preferred_element_type=jnp.float32) + b_prob, axis=-1)

    wres_vec = w_res.reshape(1, D).astype(jnp.float32)             # (1, D)
    bres = b_res.reshape(1).astype(jnp.float32)                    # (1,) scalar

    # --- tiling -------------------------------------------------------------
    tT = _pick_tile(T, tile_t)
    tS = _pick_tile(S, tile_s)
    dk = _pick_tile(D, tile_d)
    grid = (B, T // tT, S // tS, D // dk)

    genp = pl.pallas_call(
        functools.partial(_genp_kernel, compute_dtype=compute_dtype),
        # TODO(synk): on v5e, emit genP in bf16 here to halve HBM writeback.
        out_shape=jax.ShapeDtypeStruct((B, T, S), source.dtype),
        grid_spec=pltpu.PrefetchScalarGridSpec(
            num_scalar_prefetch=0,
            grid=grid,
            in_specs=[
                # target projection tile (tT, dk)
                pl.BlockSpec((None, tT, dk), lambda b, ti, si, k: (b, ti, k)),
                # source projection tile (tS, dk)
                pl.BlockSpec((None, tS, dk), lambda b, ti, si, k: (b, si, k)),
                # LinearRes weight chunk (1, dk)
                pl.BlockSpec((1, dk), lambda b, ti, si, k: (0, k)),
                # LinearRes bias: scalar in SMEM (no padded VMEM tile)
                pl.BlockSpec(memory_space=pltpu.MemorySpace.SMEM),
            ],
            out_specs=pl.BlockSpec((None, tT, tS),
                                   lambda b, ti, si, k: (b, ti, si)),
            scratch_shapes=[pltpu.VMEM((tT, tS), jnp.float32)],
        ),
        compiler_params=pltpu.CompilerParams(
            dimension_semantics=("parallel", "parallel", "parallel",
                                 "arbitrary"),
            vmem_limit_bytes=48 * 1024 * 1024,   # fits v7x's 64 MiB physical
        ),
    )(tl, sl, wres_vec, bres)

    return genp, prob


def copynet_reference(source, target, w_src, w_tgt, w_res, b_res, w_prob, b_prob):
    """Pure-JAX reference mirroring the PyTorch forward."""
    sl = source @ w_src.T                                   # (B, S, D)
    tl = target @ w_tgt.T                                   # (B, T, D)
    h = jnp.tanh(sl[:, None, :, :] + tl[:, :, None, :])     # (B, T, S, D)
    genp = (h @ w_res.T + b_res)[..., 0]                    # (B, T, S)
    prob = jax.nn.softmax(target @ w_prob.T + b_prob, axis=-1)
    return genp, prob


def _run_case(B, S, T, D, key):
    ks = jax.random.split(key, 8)
    source = jax.random.normal(ks[0], (B, S, D), dtype=jnp.float32)
    target = jax.random.normal(ks[1], (B, T, D), dtype=jnp.float32)

    # PyTorch nn.Linear convention: weights are (out, in)
    scale = 1.0 / np.sqrt(D)
    w_src = jax.random.uniform(ks[2], (D, D), jnp.float32, -scale, scale)
    w_tgt = jax.random.uniform(ks[3], (D, D), jnp.float32, -scale, scale)
    w_res = jax.random.uniform(ks[4], (1, D), jnp.float32, -scale, scale)
    b_res = jax.random.uniform(ks[5], (1,), jnp.float32, -scale, scale)
    w_prob = jax.random.uniform(ks[6], (3, D), jnp.float32, -scale, scale)
    b_prob = jax.random.uniform(ks[7], (3,), jnp.float32, -scale, scale)

    genp, prob = copynet_forward(source, target, w_src, w_tgt,
                                 w_res, b_res, w_prob, b_prob)
    jax.block_until_ready((genp, prob))

    genp_ref, prob_ref = copynet_reference(source, target, w_src, w_tgt,
                                           w_res, b_res, w_prob, b_prob)
    # D-chunked accumulation changes the reduce order -> allow ~1e-4 slack.
    np.testing.assert_allclose(np.asarray(genp), np.asarray(genp_ref),
                               rtol=1e-4, atol=1e-4)
    np.testing.assert_allclose(np.asarray(prob), np.asarray(prob_ref),
                               rtol=1e-5, atol=1e-5)


if __name__ == "__main__":
    key = jax.random.PRNGKey(0)
    k1, k2 = jax.random.split(key)

    # Tiny shapes (full-extent blocks, grid = (B,1,1,1)).
    _run_case(B=2, S=8, T=6, D=32, key=k1)

    # Small tiled shapes exercising the (B, T-tile, S-tile, D-chunk) grid:
    # grid = (2, 1, 2, 2) with 128-sized, lane-aligned blocks.
    _run_case(B=2, S=256, T=128, D=256, key=k2)

    print("KERNEL_OK")
</pallas_src>

<mosaic_0001>
module attributes {stable_mosaic.version = 11 : i64} {
  func.func @_genp_kernel(%arg0: i32, %arg1: i32, %arg2: i32, %arg3: i32, %arg4: memref<1x6x32xf32, #tpu.memory_space<vmem>>, %arg5: memref<1x8x32xf32, #tpu.memory_space<vmem>>, %arg6: memref<1x32xf32, #tpu.memory_space<vmem>>, %arg7: memref<1xf32, #tpu.memory_space<smem>>, %arg8: memref<1x6x8xf32, #tpu.memory_space<vmem>>, %arg9: memref<6x8xf32, #tpu.memory_space<vmem>>) attributes {dimension_semantics = [#tpu.dimension_semantics<parallel>, #tpu.dimension_semantics<parallel>, #tpu.dimension_semantics<parallel>, #tpu.dimension_semantics<arbitrary>], iteration_bounds = array<i64: 2, 1, 1, 1>, scalar_prefetch = 0 : i64, scratch_operands = 1 : i64, tpu.core_type = #tpu.core_type<tc>, window_params = [{transform_indices = @transform_0, window_bounds = array<i64: 1, 6, 32>}, {transform_indices = @transform_1, window_bounds = array<i64: 1, 8, 32>}, {transform_indices = @transform_2, window_bounds = array<i64: 1, 32>}, {transform_indices = @transform_3, window_bounds = array<i64: 1>}, {transform_indices = @transform_4, window_bounds = array<i64: 1, 6, 8>}]} {
    %c0_i32 = arith.constant 0 : i32
    %0 = arith.cmpi eq, %arg3, %c0_i32 : i32
    %1 = arith.extui %0 : i1 to i32
    %c0_i32_0 = arith.constant 0 : i32
    %2 = arith.cmpi ne, %1, %c0_i32_0 : i32
    scf.if %2 {
      %cst_14 = arith.constant 0.000000e+00 : f32
      %24 = vector.broadcast %cst_14 : f32 to vector<6x8xf32>
      %c0_15 = arith.constant 0 : index
      %c0_16 = arith.constant 0 : index
      %25 = vector.load %arg9[%c0_15, %c0_16] : memref<6x8xf32, #tpu.memory_space<vmem>>, vector<6x8xf32>
      tpu.vector_store %arg9[%c0_15, %c0_16], %24 {strides = array<i32>} : memref<6x8xf32, #tpu.memory_space<vmem>>, vector<6x8xf32>,
    } else {
    }
    %c0 = arith.constant 0 : index
    %c0_1 = arith.constant 0 : index
    %c0_2 = arith.constant 0 : index
    %3 = vector.load %arg4[%c0, %c0_1, %c0_2] : memref<1x6x32xf32, #tpu.memory_space<vmem>>, vector<1x6x32xf32>
    %4 = vector.shape_cast %3 : vector<1x6x32xf32> to vector<6x32xf32>
    %c0_3 = arith.constant 0 : index
    %c0_4 = arith.constant 0 : index
    %c0_5 = arith.constant 0 : index
    %5 = vector.load %arg5[%c0_3, %c0_4, %c0_5] : memref<1x8x32xf32, #tpu.memory_space<vmem>>, vector<1x8x32xf32>
    %6 = vector.shape_cast %5 : vector<1x8x32xf32> to vector<8x32xf32>
    %c0_6 = arith.constant 0 : index
    %c0_7 = arith.constant 0 : index
    %7 = vector.load %arg6[%c0_6, %c0_7] : memref<1x32xf32, #tpu.memory_space<vmem>>, vector<1x32xf32>
    %8 = vector.shape_cast %4 : vector<6x32xf32> to vector<6x1x32xf32>
    %9 = vector.shape_cast %6 : vector<8x32xf32> to vector<1x8x32xf32>
    %10 = vector.broadcast %8 : vector<6x1x32xf32> to vector<6x8x32xf32>
    %11 = vector.broadcast %9 : vector<1x8x32xf32> to vector<6x8x32xf32>
    %12 = arith.addf %10, %11 : vector<6x8x32xf32>
    %13 = math.tanh %12 : vector<6x8x32xf32>
    %c0_8 = arith.constant 0 : index
    %c0_9 = arith.constant 0 : index
    %14 = vector.load %arg9[%c0_8, %c0_9] : memref<6x8xf32, #tpu.memory_space<vmem>>, vector<6x8xf32>
    %15 = vector.shape_cast %7 : vector<1x32xf32> to vector<1x1x32xf32>
    %16 = vector.broadcast %15 : vector<1x1x32xf32> to vector<6x8x32xf32>
    %17 = arith.mulf %13, %16 : vector<6x8x32xf32>
    %cst = arith.constant dense<0.000000e+00> : vector<6x8xf32>
    %18 = vector.multi_reduction <add>, %17, %cst [2] : vector<6x8x32xf32> to vector<6x8xf32>
    %19 = arith.addf %14, %18 : vector<6x8xf32>
    %c0_10 = arith.constant 0 : index
    %c0_11 = arith.constant 0 : index
    %20 = vector.load %arg9[%c0_10, %c0_11] : memref<6x8xf32, #tpu.memory_space<vmem>>, vector<6x8xf32>
    tpu.vector_store %arg9[%c0_10, %c0_11], %19 {strides = array<i32>} : memref<6x8xf32, #tpu.memory_space<vmem>>, vector<6x8xf32>,
    %c0_i32_12 = arith.constant 0 : i32
    %21 = arith.cmpi eq, %arg3, %c0_i32_12 : i32
    %22 = arith.extui %21 : i1 to i32
    %c0_i32_13 = arith.constant 0 : i32
    %23 = arith.cmpi ne, %22, %c0_i32_13 : i32
    scf.if %23 {
      %c0_14 = arith.constant 0 : index
      %c0_15 = arith.constant 0 : index
      %24 = vector.load %arg9[%c0_14, %c0_15] : memref<6x8xf32, #tpu.memory_space<vmem>>, vector<6x8xf32>
      %c0_16 = arith.constant 0 : index
      %25 = memref.load %arg7[%c0_16] : memref<1xf32, #tpu.memory_space<smem>>
      %26 = vector.broadcast %25 : f32 to vector<6x8xf32>
      %27 = arith.addf %24, %26 : vector<6x8xf32>
      %c0_17 = arith.constant 0 : index
      %c0_18 = arith.constant 0 : index
      %c0_19 = arith.constant 0 : index
      %28 = vector.load %arg8[%c0_17, %c0_18, %c0_19] : memref<1x6x8xf32, #tpu.memory_space<vmem>>, vector<1x6x8xf32>
      %29 = vector.shape_cast %28 : vector<1x6x8xf32> to vector<6x8xf32>
      %30 = vector.shape_cast %27 : vector<6x8xf32> to vector<1x6x8xf32>
      tpu.vector_store %arg8[%c0_17, %c0_18, %c0_19], %30 {strides = array<i32>} : memref<1x6x8xf32, #tpu.memory_space<vmem>>, vector<1x6x8xf32>,
    } else {
    }
    return
  }
  func.func @transform_0(%arg0: i32, %arg1: i32, %arg2: i32, %arg3: i32) -> (i32, i32, i32) {
    %c0_i32 = arith.constant 0 : i32
    return %arg0, %arg1, %arg3 : i32, i32, i32
  }
  func.func @transform_1(%arg0: i32, %arg1: i32, %arg2: i32, %arg3: i32) -> (i32, i32, i32) {
    %c0_i32 = arith.constant 0 : i32
    return %arg0, %arg2, %arg3 : i32, i32, i32
  }
  func.func @transform_2(%arg0: i32, %arg1: i32, %arg2: i32, %arg3: i32) -> (i32, i32) {
    %c0_i32 = arith.constant 0 : i32
    %c0_i32_0 = arith.constant 0 : i32
    return %c0_i32, %arg3 : i32, i32
  }
  func.func @transform_3(%arg0: i32, %arg1: i32, %arg2: i32, %arg3: i32) -> i32 {
    %c0_i32 = arith.constant 0 : i32
    %c0_i32_0 = arith.constant 0 : i32
    return %c0_i32 : i32
  }
  func.func @transform_4(%arg0: i32, %arg1: i32, %arg2: i32, %arg3: i32) -> (i32, i32, i32) {
    %c0_i32 = arith.constant 0 : i32
    return %arg0, %arg1, %arg2 : i32, i32, i32
  }
}

</mosaic_0001>

<llo_original>
// kernel: copynet_forward.1
$region0: #{copynet_forward.1}
  #allocation0 [shape = 'u32[]', space=smem, size = 0x4, offset = 0x4, fixed_abs, tag = 'smem constant byte address 0x4 - core index']
  #allocation1 [shape = 'u32[144,128]{1,0:T(1,128)}', space=vmem, size = 0x12000, scoped, tag = 'internal scratch']
  #allocation2 [shape = 'f32[6,8]{1,0:T(8,128)}', space=vmem, size = 0x1000, scoped, tag = 'scratch operand']
  #allocation3 [shape = 'f32[1]{0:T(128)S(6)}', space=smem, size = 0x200, scoped, tag = 'scoped memory for copynet_forward.1']
  %s0 = inlined_call_operand.vmem [shape: f32[2,6,32], index: 0, kind: input, shape index: {}]
  %s1 = inlined_call_operand.vmem [shape: f32[2,8,32], index: 1, kind: input, shape index: {}]
  %s2 = inlined_call_operand.vmem [shape: f32[1,32], index: 2, kind: input, shape index: {}]
  %s3 = inlined_call_operand.<no memory space> [shape: f32[1], index: 3, kind: input, shape index: {}]
  %s4 = inlined_call_operand.vmem [shape: f32[2,6,8], index: 4, kind: output, shape index: {}]
  %s5 = sld [smem:[#allocation0]]
  $region57: #{copynet_forward.1} parent=0
    _
  %s7 = ssub.s32 1, %s5
  %s8 = scalar_select 0, %s7, %s5
  %9 = sst [smem:[#allocation3]] %s3
  loop: start=0, step=1, limit=4
  $region2: #{copynet_forward.1} parent=0 // loop_pre_header
    _
  $region3: #{copynet_forward.1} parent=0 // loop_header
    %s11 = sphi 0, %s15
    %p12 = scmp.ge.s32.totalorder %s11, 4
    %s18 = sphi 0, %s44
    %s19 = sphi 0, %s40
    %s20 = sphi 0, %s36
    %s21 = sphi 0, %s32
    %s22 = sphi 0, %s18
    %s23 = sphi 0, %s19
    %s24 = sphi 0, %s20
    %s25 = sphi 0, %s21
    %s26 = sphi 0, %s22
    %s27 = sphi 0, %s23
    %s28 = sphi 0, %s24
    %s29 = sphi 0, %s25
    %s51 = sphi 0, %s53
    %s54 = sphi 0, %s51
    %s55 = sphi 0, %s54
    %s71 = sphi 0, %s55
    %s81 = sphi 0, %s83
    %s84 = sphi 0, %s81
    %s85 = sphi 0, %s84
    %s101 = sphi 0, %s85
    %s107 = sphi 0, %s109
    %s110 = sphi 0, %s107
    %s111 = sphi 0, %s110
    %s127 = sphi 0, %s111
    %s131 = sphi 0, %s131
    %s133 = sphi 0, %s131
    %s134 = sphi 0, %s133
    %s148 = sphi 0, %s134
    %s158 = sphi 0, %s160
    %s161 = sphi 0, %s158
    %s162 = sphi 0, %s161
    %s178 = sphi 0, %s162
  $region4: #{copynet_forward.1} parent=0 // loop_header_branch
    %14 = sbr.rel (%p12) target = $region8
  $region5: #{copynet_forward.1} parent=0 // loop_body
    %s16 = ssub.s32 %s11, 1
    %s17 = ssub.s32 %s11, 2
    %s30 = sadd.s32 1, %s21
    %p31 = scmp.ge.s32.totalorder %s30, 1
    %s32 = scalar_select %p31, 0, %s30
    %s33 = sadd.s32 1, %s20
    %s34 = scalar_select %p31, %s33, %s20
    %p35 = scmp.ge.s32.totalorder %s34, 1
    %s36 = scalar_select %p35, 0, %s34
    %s37 = sadd.s32 1, %s19
    %s38 = scalar_select %p35, %s37, %s19
    %p39 = scmp.ge.s32.totalorder %s38, 1
    %s40 = scalar_select %p39, 0, %s38
    %s41 = sadd.s32 1, %s18
    %s42 = scalar_select %p39, %s41, %s18
    %p43 = scmp.ge.s32.totalorder %s42, 2
    %s44 = scalar_select %p43, 0, %s42
    %s45 = ssub.s32 %s18, %s44
    %s46 = ssub.s32 %s19, %s40
    %s47 = sor.u32 %s45, %s46
    %s48 = ssub.s32 %s21, %s32
    %s49 = sor.u32 %s47, %s48
    %p50 = scmp.eq.s32.totalorder %s49, 0
    %s52 = sadd.s32 %s51, 1
    %s53 = scalar_select %p50, %s51, %s52
    %p56 = pneg %p50
    %p57 = scmp.eq.s32.totalorder %s11, 1
    %p58 = por %p56, %p57
    %p59 = scmp.ne.s32.totalorder %s51, %s54
    %p60 = scmp.eq.s32.totalorder %s11, 0
    %p61 = por %p59, %p60
    %p62 = scmp.ne.s32.totalorder %s51, %s54
    %p63 = scmp.eq.s32.totalorder %s16, 1
    %p64 = por %p62, %p63
    %p65 = scmp.ne.s32.totalorder %s54, %s55
    %p66 = scmp.eq.s32.totalorder %s16, 0
    %p67 = por %p65, %p66
    %p68 = scmp.ne.s32.totalorder %s54, %s55
    %p69 = scmp.eq.s32.totalorder %s17, 1
    %p70 = por %p68, %p69
    %p72 = scmp.ne.s32.totalorder %s55, %s71
    %p73 = scmp.eq.s32.totalorder %s17, 0
    %p74 = por %p72, %p73
    %s75 = ssub.s32 %s18, %s44
    %s76 = ssub.s32 %s20, %s36
    %s77 = sor.u32 %s75, %s76
    %s78 = ssub.s32 %s21, %s32
    %s79 = sor.u32 %s77, %s78
    %p80 = scmp.eq.s32.totalorder %s79, 0
    %s82 = sadd.s32 %s81, 1
    %s83 = scalar_select %p80, %s81, %s82
    %p86 = pneg %p80
    %p87 = scmp.eq.s32.totalorder %s11, 1
    %p88 = por %p86, %p87
    %p89 = scmp.ne.s32.totalorder %s81, %s84
    %p90 = scmp.eq.s32.totalorder %s11, 0
    %p91 = por %p89, %p90
    %p92 = scmp.ne.s32.totalorder %s81, %s84
    %p93 = scmp.eq.s32.totalorder %s16, 1
    %p94 = por %p92, %p93
    %p95 = scmp.ne.s32.totalorder %s84, %s85
    %p96 = scmp.eq.s32.totalorder %s16, 0
    %p97 = por %p95, %p96
    %p98 = scmp.ne.s32.totalorder %s84, %s85
    %p99 = scmp.eq.s32.totalorder %s17, 1
    %p100 = por %p98, %p99
    %p102 = scmp.ne.s32.totalorder %s85, %s101
    %p103 = scmp.eq.s32.totalorder %s17, 0
    %p104 = por %p102, %p103
    %s105 = ssub.s32 %s21, %s32
    %p106 = scmp.eq.s32.totalorder %s105, 0
    %s108 = sadd.s32 %s107, 1
    %s109 = scalar_select %p106, %s107, %s108
    %p112 = pneg %p106
    %p113 = scmp.eq.s32.totalorder %s11, 1
    %p114 = por %p112, %p113
    %p115 = scmp.ne.s32.totalorder %s107, %s110
    %p116 = scmp.eq.s32.totalorder %s11, 0
    %p117 = por %p115, %p116
    %p118 = scmp.ne.s32.totalorder %s107, %s110
    %p119 = scmp.eq.s32.totalorder %s16, 1
    %p120 = por %p118, %p119
    %p121 = scmp.ne.s32.totalorder %s110, %s111
    %p122 = scmp.eq.s32.totalorder %s16, 0
    %p123 = por %p121, %p122
    %p124 = scmp.ne.s32.totalorder %s110, %s111
    %p125 = scmp.eq.s32.totalorder %s17, 1
    %p126 = por %p124, %p125
    %p128 = scmp.ne.s32.totalorder %s111, %s127
    %p129 = scmp.eq.s32.totalorder %s17, 0
    %p130 = por %p128, %p129
    %s132 = sadd.s32 %s131, 1
    %p135 = scmp.eq.s32.totalorder %s11, 1
    %p136 = scmp.ne.s32.totalorder %s131, %s133
    %p137 = scmp.eq.s32.totalorder %s11, 0
    %p138 = por %p136, %p137
    %p139 = scmp.ne.s32.totalorder %s131, %s133
    %p140 = scmp.eq.s32.totalorder %s16, 1
    %p141 = por %p139, %p140
    %p142 = scmp.ne.s32.totalorder %s133, %s134
    %p143 = scmp.eq.s32.totalorder %s16, 0
    %p144 = por %p142, %p143
    %p145 = scmp.ne.s32.totalorder %s133, %s134
    %p146 = scmp.eq.s32.totalorder %s17, 1
    %p147 = por %p145, %p146
    %p149 = scmp.ne.s32.totalorder %s134, %s148
    %p150 = scmp.eq.s32.totalorder %s17, 0
    %p151 = por %p149, %p150
    %s152 = ssub.s32 %s18, %s44
    %s153 = ssub.s32 %s19, %s40
    %s154 = sor.u32 %s152, %s153
    %s155 = ssub.s32 %s20, %s36
    %s156 = sor.u32 %s154, %s155
    %p157 = scmp.eq.s32.totalorder %s156, 0
    %s159 = sadd.s32 %s158, 1
    %s160 = scalar_select %p157, %s158, %s159
    %p163 = pneg %p157
    %p164 = scmp.eq.s32.totalorder %s11, 1
    %p165 = por %p163, %p164
    %p166 = scmp.ne.s32.totalorder %s158, %s161
    %p167 = scmp.eq.s32.totalorder %s11, 0
    %p168 = por %p166, %p167
    %p169 = scmp.ne.s32.totalorder %s158, %s161
    %p170 = scmp.eq.s32.totalorder %s16, 1
    %p171 = por %p169, %p170
    %p172 = scmp.ne.s32.totalorder %s161, %s162
    %p173 = scmp.eq.s32.totalorder %s16, 0
    %p174 = por %p172, %p173
    %p175 = scmp.ne.s32.totalorder %s161, %s162
    %p176 = scmp.eq.s32.totalorder %s17, 1
    %p177 = por %p175, %p176
    %p179 = scmp.ne.s32.totalorder %s162, %s178
    %p180 = scmp.eq.s32.totalorder %s17, 0
    %p181 = por %p179, %p180
    %p182 = scmp.le.s32.totalorder 1, %s11
    %p183 = scmp.lt.s32.totalorder %s11, 3
    %p184 = pnand %p182, %p183
    %p185 = pneg %p184
    // Predicated region
    $region9: #{copynet_forward.1} parent=5 // pred_check
      _
    $region10: #{copynet_forward.1} parent=5 // pred_check_branch
      %187 = sbr.rel (%p184) target = $region12
    $region11: #{copynet_forward.1} parent=5 // pred_region
      %s188 = ssub.s32 %s11, 1
      // Predicated region
      $region13: #{copynet_forward.1} parent=11 // pred_check
        %p189 = pneg %p123
      $region14: #{copynet_forward.1} parent=11 // pred_check_branch
        %191 = sbr.rel (%p189) target = $region16
      $region15: #{copynet_forward.1} parent=11 // pred_region
        %p192 = scmp.lt.s32.totalorder %s25, 0
        %s193 = scalar_select %p192, %s25, 0
        %s194 = scalar_lea.vmem %s2, %s193
      $region16: #{copynet_forward.1} parent=11 // pred_fallthru
        _
      // Predicated region
      $region17: #{copynet_forward.1} parent=11 // pred_check
        %p195 = pneg %p144
      $region18: #{copynet_forward.1} parent=11 // pred_check_branch
        %197 = sbr.rel (%p195) target = $region20
      $region19: #{copynet_forward.1} parent=11 // pred_region
        _
      $region20: #{copynet_forward.1} parent=11 // pred_fallthru
        _
    $region12: #{copynet_forward.1} parent=5 // pred_fallthru
      _
    %p198 = scmp.lt.s32.totalorder %s11, 2
    // Predicated region
    $region21: #{copynet_forward.1} parent=5 // pred_check
      %p199 = pneg %p198
    $region22: #{copynet_forward.1} parent=5 // pred_check_branch
      %201 = sbr.rel (%p199) target = $region24
    $region23: #{copynet_forward.1} parent=5 // pred_region
      // Predicated region
      $region25: #{copynet_forward.1} parent=23 // pred_check
        %p202 = pneg %p61
      $region26: #{copynet_forward.1} parent=23 // pred_check_branch
        %204 = sbr.rel (%p202) target = $region28
      $region27: #{copynet_forward.1} parent=23 // pred_region
        %p205 = scmp.lt.s32.totalorder %s18, 1
        %s206 = scalar_select %p205, %s18, 1
        %p207 = scmp.lt.s32.totalorder %s19, 0
        %s208 = scalar_select %p207, %s19, 0
        %p209 = scmp.lt.s32.totalorder %s21, 0
        %s210 = scalar_select %p209, %s21, 0
        %s211 = sadd.s32 %s210, %s208
        %s212 = sadd.s32 %s211, %s206
        %s213 = smul.addr %s212, 8
        %s214 = scalar_lea.vmem %s0, %s213
      $region28: #{copynet_forward.1} parent=23 // pred_fallthru
        _
      // Predicated region
      $region29: #{copynet_forward.1} parent=23 // pred_check
        %p215 = pneg %p91
      $region30: #{copynet_forward.1} parent=23 // pred_check_branch
        %217 = sbr.rel (%p215) target = $region32
      $region31: #{copynet_forward.1} parent=23 // pred_region
        %p218 = scmp.lt.s32.totalorder %s18, 1
        %s219 = scalar_select %p218, %s18, 1
        %p220 = scmp.lt.s32.totalorder %s20, 0
        %s221 = scalar_select %p220, %s20, 0
        %p222 = scmp.lt.s32.totalorder %s21, 0
        %s223 = scalar_select %p222, %s21, 0
        %s224 = sadd.s32 %s223, %s221
        %s225 = sadd.s32 %s224, %s219
        %s226 = smul.addr %s225, 8
        %s227 = scalar_lea.vmem %s1, %s226
      $region32: #{copynet_forward.1} parent=23 // pred_fallthru
        _
    $region24: #{copynet_forward.1} parent=5 // pred_fallthru
      _
    %p228 = scmp.le.s32.totalorder 1, %s11
    %p229 = scmp.lt.s32.totalorder %s11, 3
    %p230 = pnand %p228, %p229
    %p231 = pneg %p230
    // Predicated region
    $region33: #{copynet_forward.1} parent=5 // pred_check
      _
    $region34: #{copynet_forward.1} parent=5 // pred_check_branch
      %233 = sbr.rel (%p230) target = $region36
    $region35: #{copynet_forward.1} parent=5 // pred_region
      %s234 = ssub.s32 %s11, 1
      %p235 = scmp.lt.s32.totalorder %s22, 1
      %s236 = scalar_select %p235, %s22, 1
      %p237 = scmp.lt.s32.totalorder %s23, 0
      %s238 = scalar_select %p237, %s23, 0
      %p239 = scmp.lt.s32.totalorder %s25, 0
      %s240 = scalar_select %p239, %s25, 0
      %s241 = sadd.s32 %s240, %s238
      %s242 = sadd.s32 %s241, %s236
      %s243 = smul.addr %s242, 8
      %s244 = scalar_lea.vmem %s0, %s243
      %p245 = pneg %p67
      %p246 = pneg %p64
      %p247 = scmp.lt.s32.totalorder %s22, 1
      %s248 = scalar_select %p247, %s22, 1
      %p249 = scmp.lt.s32.totalorder %s24, 0
      %s250 = scalar_select %p249, %s24, 0
      %p251 = scmp.lt.s32.totalorder %s25, 0
      %s252 = scalar_select %p251, %s25, 0
      %s253 = sadd.s32 %s252, %s250
      %s254 = sadd.s32 %s253, %s248
      %s255 = smul.addr %s254, 8
      %s256 = scalar_lea.vmem %s1, %s255
      %p257 = pneg %p97
      %p258 = pneg %p94
      %p259 = scmp.lt.s32.totalorder %s25, 0
      %s260 = scalar_select %p259, %s25, 0
      %s261 = scalar_lea.vmem %s2, %s260
      %p262 = pneg %p123
      %p263 = pneg %p120
      %p264 = pneg %p144
      %p265 = pneg %p141
      %p266 = pneg %p174
      %p267 = pneg %p171
      %p268 = scmp.lt.s32.totalorder %s22, 1
      %s269 = scalar_select %p268, %s22, 1
      %p270 = scmp.lt.s32.totalorder %s23, 0
      %s271 = scalar_select %p270, %s23, 0
      %p272 = scmp.lt.s32.totalorder %s24, 0
      %s273 = scalar_select %p272, %s24, 0
      %s274 = sadd.s32 %s273, %s271
      %s275 = sadd.s32 %s274, %s269
      %s276 = smul.addr %s275, 8
      %s277 = scalar_lea.vmem %s4, %s276
      %p278 = scmp.lt.s32.totalorder %s22, 1
      %s279 = scalar_select %p278, %s22, 1
      %p280 = scmp.lt.s32.totalorder %s23, 0
      %s281 = scalar_select %p280, %s23, 0
      %p282 = scmp.lt.s32.totalorder %s25, 0
      %s283 = scalar_select %p282, %s25, 0
      %s284 = sadd.s32 %s283, %s281
      %s285 = sadd.s32 %s284, %s279
      %s286 = smul.addr %s285, 8
      %s287 = scalar_lea.vmem %s0, %s286
      %p288 = scmp.lt.s32.totalorder %s22, 1
      %s289 = scalar_select %p288, %s22, 1
      %p290 = scmp.lt.s32.totalorder %s24, 0
      %s291 = scalar_select %p290, %s24, 0
      %p292 = scmp.lt.s32.totalorder %s25, 0
      %s293 = scalar_select %p292, %s25, 0
      %s294 = sadd.s32 %s293, %s291
      %s295 = sadd.s32 %s294, %s289
      %s296 = smul.addr %s295, 8
      %s297 = scalar_lea.vmem %s1, %s296
      %p298 = scmp.lt.s32.totalorder %s25, 0
      %s299 = scalar_select %p298, %s25, 0
      %s300 = scalar_lea.vmem %s2, %s299
      %p301 = scmp.lt.s32.totalorder %s22, 1
      %s302 = scalar_select %p301, %s22, 1
      %p303 = scmp.lt.s32.totalorder %s23, 0
      %s304 = scalar_select %p303, %s23, 0
      %p305 = scmp.lt.s32.totalorder %s24, 0
      %s306 = scalar_select %p305, %s24, 0
      %s307 = sadd.s32 %s306, %s304
      %s308 = sadd.s32 %s307, %s302
      %s309 = smul.addr %s308, 8
      %s310 = scalar_lea.vmem %s4, %s309
      %p311 = scmp.eq.s32.totalorder %s25, 0
      // Predicated region
      $region37: #{copynet_forward.1} parent=35 // pred_check
        %p312 = pneg %p311
      $region38: #{copynet_forward.1} parent=35 // pred_check_branch
        %314 = sbr.rel (%p312) target = $region40
      $region39: #{copynet_forward.1} parent=35 // pred_region
        %vm315 = vcmask 62464
        %316 = vst.msk [vmem:[#allocation2] sm:$0x3f] %vm315, 0.0
      $region40: #{copynet_forward.1} parent=35 // pred_fallthru
        _
      %v317 = vld [vmem:[%s287] sm:$0x3f]
      %v318 = vld [vmem:[%s297] sm:$0xff]
      %v319 = vld [vmem:[%s300] sm:$0x1]
      %v321 = vcombine.high %v317, %v317
      %v323 = vunpack.c.l.s4 1966171168
      %v324 = vunpack.c.0.s8 %v323
      %v325 = vlaneseq
      %v326 = vshrl.u32 %v325, 7
      %v327 = vsub.s32 %v324, %v326
      %v328 = vrot.slane %v317, %v327
      %v330 = vunpack.c.l.s4 1966171168
      %v331 = vunpack.c.0.s8 %v330
      %v332 = vlaneseq
      %v333 = vshrl.u32 %v332, 7
      %v334 = vsub.s32 %v331, %v333
      %v335 = vrot.slane %v321, %v334
      %v336 = vcombine.high %v328, %v328
      %v337 = vcombine.high %v335, %v335
      %v339 = vunpack.c.l.s4 1966171168
      %v340 = vunpack.c.0.s8 %v339
      %v341 = vlaneseq
      %v342 = vshrl.u32 %v341, 7
      %v343 = vsub.s32 %v340, %v342
      %v344 = vrot.slane %v328, %v343
      %v346 = vunpack.c.l.s4 1966171168
      %v347 = vunpack.c.0.s8 %v346
      %v348 = vlaneseq
      %v349 = vshrl.u32 %v348, 7
      %v350 = vsub.s32 %v347, %v349
      %v351 = vrot.slane %v335, %v350
      %v353 = vunpack.c.l.s4 1966171168
      %v354 = vunpack.c.0.s8 %v353
      %v355 = vlaneseq
      %v356 = vshrl.u32 %v355, 7
      %v357 = vsub.s32 %v354, %v356
      %v358 = vrot.slane %v336, %v357
      %v360 = vunpack.c.l.s4 1966171168
      %v361 = vunpack.c.0.s8 %v360
      %v362 = vlaneseq
      %v363 = vshrl.u32 %v362, 7
      %v364 = vsub.s32 %v361, %v363
      %v365 = vrot.slane %v337, %v364
      %v366 = vcombine.high %v344, %v344
      %v367 = vcombine.high %v358, %v358
      %v368 = vlaneseq
      %v369 = vshrl.u32 %v368, 7
      %v370 = vsub.s32 0, %v369
      %v371 = vrot.slane %v344, %v370
      %v372 = vlaneseq
      %v373 = vshrl.u32 %v372, 7
      %v374 = vsub.s32 0, %v373
      %v375 = vrot.slane %v358, %v374
      %v376 = vlaneseq
      %v377 = vshrl.u32 %v376, 7
      %v378 = vsub.s32 0, %v377
      %v379 = vrot.slane %v366, %v378
      %v380 = vlaneseq
      %v381 = vshrl.u32 %v380, 7
      %v382 = vsub.s32 0, %v381
      %v383 = vrot.slane %v367, %v382
      %v384 = vlaneseq
      %v385 = vshrl.u32 %v384, 7
      %v386 = vsub.s32 0, %v385
      %v387 = vrot.slane %v351, %v386
      %v388 = vlaneseq
      %v389 = vshrl.u32 %v388, 7
      %v390 = vsub.s32 0, %v389
      %v391 = vrot.slane %v365, %v390
      %v398 = vadd.f32 %v371, %v318
      %v399 = vadd.f32 %v375, %v318
      %v400 = vadd.f32 %v379, %v318
      %v401 = vadd.f32 %v383, %v318
      %v402 = vadd.f32 %v387, %v318
      %v403 = vadd.f32 %v391, %v318
      %v404 = vtanh.pop %v398
      %v405 = vtanh.pop %v399
      %v406 = vtanh.pop %v400
      %v407 = vtanh.pop %v401
      %v408 = vtanh.pop %v402
      %v409 = vtanh.pop %v403
      %v410 = vld [vmem:[#allocation2] sm:$0x3f]
      %v412 = vlaneseq
      %v413 = vshrl.u32 %v412, 7
      %v414 = vsub.s32 0, %v413
      %v415 = vrot.slane %v319, %v414
      %v417 = vmul.f32 %v404, %v415
      %v418 = vmul.f32 %v405, %v415
      %v419 = vmul.f32 %v406, %v415
      %v420 = vmul.f32 %v407, %v415
      %v421 = vmul.f32 %v408, %v415
      %v422 = vmul.f32 %v409, %v415
      %vm423 = vcmask 261120
      %v424 = vsel %vm423, %v417, 0.0
      %425 = vadd.xlane.f32.xlu0 %v424
      %v426 = vpop.xlane.xlu0 %425
      %v427 = vsel %vm423, %v418, 0.0
      %428 = vadd.xlane.f32.xlu0 %v427
      %v429 = vpop.xlane.xlu0 %428
      %v430 = vsel %vm423, %v419, 0.0
      %431 = vadd.xlane.f32.xlu0 %v430
      %v432 = vpop.xlane.xlu0 %431
      %v433 = vsel %vm423, %v420, 0.0
      %434 = vadd.xlane.f32.xlu0 %v433
      %v435 = vpop.xlane.xlu0 %434
      %v436 = vsel %vm423, %v421, 0.0
      %437 = vadd.xlane.f32.xlu0 %v436
      %v438 = vpop.xlane.xlu0 %437
      %v439 = vsel %vm423, %v422, 0.0
      %440 = vadd.xlane.f32.xlu0 %v439
      %v441 = vpop.xlane.xlu0 %440
      %v448 = vlaneseq
      %v449 = vand.u32 %v448, 127
      %v450 = vlaneseq
      %v451 = vshrl.u32 %v450, 7
      %v452 = vsub.s32 %v449, %v451
      %v453 = vrot.slane %v426, %v452
      %v454 = vlaneseq
      %v455 = vshrl.u32 %v454, 7
      %v456 = vsub.s32 %v449, %v455
      %v457 = vrot.slane %v429, %v456
      %v458 = vlaneseq
      %v459 = vshrl.u32 %v458, 7
      %v460 = vsub.s32 %v449, %v459
      %v461 = vrot.slane %v432, %v460
      %v462 = vlaneseq
      %v463 = vshrl.u32 %v462, 7
      %v464 = vsub.s32 %v449, %v463
      %v465 = vrot.slane %v435, %v464
      %v466 = vlaneseq
      %v467 = vshrl.u32 %v466, 7
      %v468 = vsub.s32 %v449, %v467
      %v469 = vrot.slane %v438, %v468
      %v470 = vlaneseq
      %v471 = vshrl.u32 %v470, 7
      %v472 = vsub.s32 %v449, %v471
      %v473 = vrot.slane %v441, %v472
      %vm474 = vcmask 1041409
      %v475 = vsel %vm474, %v457, %v453
      %vm476 = vcmask 1042434
      %v477 = vsel %vm476, %v461, %v475
      %vm478 = vcmask 1043459
      %v479 = vsel %vm478, %v465, %v477
      %vm480 = vcmask 1044484
      %v481 = vsel %vm480, %v469, %v479
      %vm482 = vcmask 1045509
      %v483 = vsel %vm482, %v473, %v481
      %v485 = vadd.f32 %v410, %v483
      %vm486 = vcmask 62464
      %487 = vst.msk [vmem:[#allocation2] sm:$0x3f] %vm486, %v485
      // Predicated region
      $region41: #{copynet_forward.1} parent=35 // pred_check
        %p488 = pneg %p311
      $region42: #{copynet_forward.1} parent=35 // pred_check_branch
        %490 = sbr.rel (%p488) target = $region44
      $region43: #{copynet_forward.1} parent=35 // pred_region
        %v491 = vld [vmem:[#allocation2] sm:$0x3f]
        %s492 = sld [smem:[#allocation3]]
        %v493 = vstv %s492
        %v494 = vadd.f32 %v491, %v493
        %495 = vst.msk [vmem:[%s310] sm:$0x3f] %vm486, %v494
      $region44: #{copynet_forward.1} parent=35 // pred_fallthru
        _
      %p496 = scmp.lt.s32.totalorder %s22, 1
      %s497 = scalar_select %p496, %s22, 1
      %p498 = scmp.lt.s32.totalorder %s23, 0
      %s499 = scalar_select %p498, %s23, 0
      %p500 = scmp.lt.s32.totalorder %s24, 0
      %s501 = scalar_select %p500, %s24, 0
      %s502 = sadd.s32 %s501, %s499
      %s503 = sadd.s32 %s502, %s497
      %s504 = smul.addr %s503, 8
      %s505 = scalar_lea.vmem %s4, %s504
      // Predicated region
      $region45: #{copynet_forward.1} parent=35 // pred_check
        %p506 = pneg %p171
      $region46: #{copynet_forward.1} parent=35 // pred_check_branch
        %508 = sbr.rel (%p506) target = $region48
      $region47: #{copynet_forward.1} parent=35 // pred_region
        _
      $region48: #{copynet_forward.1} parent=35 // pred_fallthru
        _
    $region36: #{copynet_forward.1} parent=5 // pred_fallthru
      _
    %p509 = scmp.le.s32.totalorder 2, %s11
    // Predicated region
    $region49: #{copynet_forward.1} parent=5 // pred_check
      %p510 = pneg %p509
    $region50: #{copynet_forward.1} parent=5 // pred_check_branch
      %512 = sbr.rel (%p510) target = $region52
    $region51: #{copynet_forward.1} parent=5 // pred_region
      %s513 = ssub.s32 %s11, 2
      // Predicated region
      $region53: #{copynet_forward.1} parent=51 // pred_check
        %p514 = pneg %p177
      $region54: #{copynet_forward.1} parent=51 // pred_check_branch
        %516 = sbr.rel (%p514) target = $region56
      $region55: #{copynet_forward.1} parent=51 // pred_region
        %p517 = scmp.lt.s32.totalorder %s26, 1
        %s518 = scalar_select %p517, %s26, 1
        %p519 = scmp.lt.s32.totalorder %s27, 0
        %s520 = scalar_select %p519, %s27, 0
        %p521 = scmp.lt.s32.totalorder %s28, 0
        %s522 = scalar_select %p521, %s28, 0
        %s523 = sadd.s32 %s522, %s520
        %s524 = sadd.s32 %s523, %s518
        %s525 = smul.addr %s524, 8
        %s526 = scalar_lea.vmem %s4, %s525
      $region56: #{copynet_forward.1} parent=51 // pred_fallthru
        _
    $region52: #{copynet_forward.1} parent=5 // pred_fallthru
      _
  $region6: #{copynet_forward.1} parent=0 // loop_footer
    %s15 = sadd.s32 1, %s11
  $region7: #{copynet_forward.1} parent=0 // loop_footer_branch
    %10 = sbr.rel target = $region3
  $region8: #{copynet_forward.1} parent=0 // loop_exit
    _

</llo_original>
